<compile_context>
chip_gen: v5e
topology: v5e:2x2
jax: 0.10.0
libtpu: 0.0.40
codegen_flags: <defaults>
</compile_context>

<pallas_src>
import math

import jax
import jax.numpy as jnp
from jax.experimental import pallas as pl
from jax.experimental.pallas import tpu as pltpu

_LANE = 128


def _cdiv(a, b):
    return -(-a // b)


def _round_up(x, m):
    return ((x + m - 1) // m) * m


def _sublane(dtype):
    # f32 -> 8 rows per vreg tile, bf16 -> 16, int8/fp8 -> 32.
    return max(8, 32 // jnp.dtype(dtype).itemsize)


def _vmem_capacity_bytes():
    try:
        return int(pltpu.get_tpu_info().vmem_capacity_bytes)
    except Exception:
        return 64 << 20  # conservative: v7x per-TensorCore physical VMEM


def _project_kernel(x_ref, w_ref, o_ref):
    # x_ref: (tm, h_dim), w_ref: (h_dim, tn), o_ref: (tm, tn)
    o_ref[...] = jnp.dot(
        x_ref[...], w_ref[...], preferred_element_type=jnp.float32
    ).astype(o_ref.dtype)


@jax.jit
def _project(x, w_t):
    """x: (N, h_dim) @ w_t: (h_dim, out_dim) -> (N, out_dim), tiled matmul."""
    n, h_dim = x.shape
    out_dim = w_t.shape[1]
    itemsize = jnp.dtype(x.dtype).itemsize
    sub = _sublane(x.dtype)

    vmem_cap = _vmem_capacity_bytes()
    usable_vmem = vmem_cap - (8 << 20)  # compiler / pipeline headroom

    # ---- Column (out_dim) tiling: only when the full weight slab would eat
    # more than ~1/4 of usable VMEM. tn stays a multiple of 128 -> lane-dense
    # stores for the wide case; small out_dim keeps full width (masked vst is
    # far cheaper than 8x padded writes).
    w_bytes = h_dim * out_dim * itemsize
    if out_dim > 512 and w_bytes > usable_vmem // 4:
        tn = 512
        col_blocks = _cdiv(out_dim, tn)
    else:
        tn = out_dim
        col_blocks = 1

    # ---- Row tiling: target ~4 MiB per (x-tile + out-tile) pair so DMAs are
    # large and the ~0.35 us/step grid overhead is amortized.
    row_budget = 4 << 20
    per_row = (h_dim + tn) * itemsize
    tm = max(sub, (row_budget // per_row) // sub * sub)
    tm = min(tm, _round_up(n, sub))
    row_blocks = _cdiv(n, tm)

    # ---- v7x megacore balance: prefer an even number (>= 2) of row blocks so
    # the "parallel" row axis shards evenly across two TensorCores.
    if n >= 256:
        if row_blocks == 1:
            tm = _round_up(_cdiv(n, 2), sub)
            row_blocks = _cdiv(n, tm)
        elif row_blocks % 2 == 1:
            tm = _round_up(_cdiv(n, row_blocks + 1), sub)
            row_blocks = _cdiv(n, tm)

    grid = (row_blocks, col_blocks)
    total_steps = row_blocks * col_blocks

    # ---- Pipeline depths: deeper buffering on tiny activation tiles when the
    # grid is long enough to benefit; single-buffer the constant weight block.
    x_tile_bytes = tm * h_dim * itemsize
    if x_tile_bytes < (1 << 20) and total_steps >= 3:
        x_bufs = 3
        x_spec = pl.BlockSpec((tm, h_dim), lambda i, j: (i, 0),
                              pipeline_mode=pl.Buffered(3))
    else:
        x_bufs = 2
        x_spec = pl.BlockSpec((tm, h_dim), lambda i, j: (i, 0))

    if col_blocks == 1 and total_steps > 1:
        w_bufs = 1
        w_spec = pl.BlockSpec((h_dim, tn), lambda i, j: (0, 0),
                              pipeline_mode=pl.Buffered(1))
    else:
        w_bufs = 2
        w_spec = pl.BlockSpec((h_dim, tn), lambda i, j: (0, j))

    o_spec = pl.BlockSpec((tm, tn), lambda i, j: (i, j))

    # ---- Chip-aware VMEM limit derived from the actual tile footprint.
    vmem_needed = (
        w_bufs * h_dim * tn * itemsize
        + x_bufs * tm * h_dim * itemsize
        + 2 * tm * tn * itemsize
    )
    vmem_limit = int(1.3 * vmem_needed) + (2 << 20)
    vmem_limit = max(vmem_limit, 16 << 20)
    vmem_limit = min(vmem_limit, vmem_cap - (4 << 20))

    cost = pl.CostEstimate(
        flops=2 * n * h_dim * out_dim,
        transcendentals=0,
        bytes_accessed=(n * h_dim + h_dim * out_dim + n * out_dim) * itemsize,
    )

    return pl.pallas_call(
        _project_kernel,
        out_shape=jax.ShapeDtypeStruct((n, out_dim), x.dtype),
        grid_spec=pltpu.PrefetchScalarGridSpec(
            num_scalar_prefetch=0,
            grid=grid,
            in_specs=[x_spec, w_spec],
            out_specs=o_spec,
        ),
        compiler_params=pltpu.CompilerParams(
            dimension_semantics=("parallel", "parallel"),
            vmem_limit_bytes=vmem_limit,
        ),
        cost_estimate=cost,
    )(x, w_t)


class MLPFollowModel:
    """JAX/Pallas port of MLP_follow_model: h[i] = h[i] @ W.T per node type."""

    # Above this many total rows, concat/split HBM round trips cost more than
    # one extra ~1 us kernel launch per node type -> project each type directly.
    _FUSE_ROW_LIMIT = 4096

    def __init__(self, gnn_model, h_dim, out_dim, *, key,
                 param_dtype=jnp.float32):
        self.gnn_model = gnn_model
        self.h_dim = h_dim
        self.out_dim = out_dim
        self.param_dtype = param_dtype
        # nn.Linear(h_dim, out_dim, bias=False): weight (out_dim, h_dim),
        # init ~ U(-1/sqrt(h_dim), 1/sqrt(h_dim)).
        bound = 1.0 / math.sqrt(h_dim)
        w = jax.random.uniform(key, (out_dim, h_dim), dtype=jnp.float32,
                               minval=-bound, maxval=bound)
        # Pre-transposed (h_dim, out_dim); NO zero-padding of output columns.
        self.w_t = w.T.astype(param_dtype)

    def _apply(self, x):
        return _project(x.astype(self.param_dtype), self.w_t)

    def __call__(self, hg, h=None, category=None):
        if h is None:
            h = self.gnn_model(hg)
        else:
            h = self.gnn_model(hg, h)

        keys = list(h.keys())
        feats = [h[k] for k in keys]
        sizes = [f.shape[0] for f in feats]
        total = sum(sizes)

        if len(feats) > 1 and total <= self._FUSE_ROW_LIMIT:
            # Tiny per-type tensors: one fused launch beats several launches;
            # the concat/split bytes are negligible at this size.
            fused = jnp.concatenate(
                [f.astype(self.param_dtype) for f in feats], axis=0)
            proj = _project(fused, self.w_t)
            out, off = {}, 0
            for k, sz in zip(keys, sizes):
                out[k] = proj[off:off + sz]
                off += sz
            return out

        # Large tensors: skip the concat/split HBM round trips; one kernel
        # call per node type (same weight, compile cache keyed by shape).
        return {k: self._apply(f) for k, f in zip(keys, feats)}


# TODO(synk): the wrapped gnn_model is an arbitrary user-supplied module with
# no fixed forward; a pass-through placeholder on the feature dict is used.
def _identity_gnn(hg, h=None):
    return h


if __name__ == "__main__":
    key = jax.random.PRNGKey(0)
    k_w, k_a, k_b = jax.random.split(key, 3)

    h_dim, out_dim = 32, 16
    model = MLPFollowModel(_identity_gnn, h_dim, out_dim, key=k_w)

    # Heterogeneous-graph style feature dict: two node types (sizes chosen so
    # the fused call exercises the multi-step, megacore-balanced row grid).
    h = {
        "paper": jax.random.normal(k_a, (300, h_dim), dtype=jnp.float32),
        "author": jax.random.normal(k_b, (26, h_dim), dtype=jnp.float32),
    }

    out = model(hg=None, h=dict(h))
    out = jax.tree_util.tree_map(jax.block_until_ready, out)

    # Reference check against plain JAX (x @ W.T), f32 path.
    for k, v in h.items():
        ref = v @ model.w_t.astype(jnp.float32)
        assert out[k].shape == (v.shape[0], out_dim)
        assert jnp.allclose(out[k], ref, atol=1e-5, rtol=1e-5)

    # bf16 production path (halved HBM traffic on v6e/v7x), looser tolerance.
    model_bf16 = MLPFollowModel(_identity_gnn, h_dim, out_dim, key=k_w,
                                param_dtype=jnp.bfloat16)
    out_bf16 = model_bf16(hg=None, h=dict(h))
    out_bf16 = jax.tree_util.tree_map(jax.block_until_ready, out_bf16)
    for k, v in h.items():
        ref = v @ model.w_t.astype(jnp.float32)
        assert out_bf16[k].shape == (v.shape[0], out_dim)
        assert jnp.allclose(out_bf16[k].astype(jnp.float32), ref,
                            atol=6e-2, rtol=6e-2)

    print("KERNEL_OK")
</pallas_src>

<mosaic_0001>
module attributes {stable_mosaic.version = 11 : i64} {
  func.func @_project_kernel(%arg0: i32, %arg1: i32, %arg2: memref<168x32xf32, #tpu.memory_space<vmem>>, %arg3: memref<32x16xf32, #tpu.memory_space<vmem>>, %arg4: memref<168x16xf32, #tpu.memory_space<vmem>>) attributes {dimension_semantics = [#tpu.dimension_semantics<parallel>, #tpu.dimension_semantics<parallel>], iteration_bounds = array<i64: 2, 1>, scalar_prefetch = 0 : i64, scratch_operands = 0 : i64, tpu.core_type = #tpu.core_type<tc>, window_params = [{transform_indices = @transform_0, window_bounds = array<i64: 168, 32>}, {pipeline_mode = #tpu.pipeline_mode<synchronous>, transform_indices = @transform_1, window_bounds = array<i64: 32, 16>}, {transform_indices = @transform_2, window_bounds = array<i64: 168, 16>}]} {
    %c0 = arith.constant 0 : index
    %c0_0 = arith.constant 0 : index
    %0 = vector.load %arg2[%c0, %c0_0] : memref<168x32xf32, #tpu.memory_space<vmem>>, vector<168x32xf32>
    %c0_1 = arith.constant 0 : index
    %c0_2 = arith.constant 0 : index
    %1 = vector.load %arg3[%c0_1, %c0_2] : memref<32x16xf32, #tpu.memory_space<vmem>>, vector<32x16xf32>
    %cst = arith.constant dense<0.000000e+00> : vector<168x16xf32>
    %2 = tpu.matmul %0, %1, %cst {dimension_numbers = #tpu.dot_dimension_numbers<[1], [0], [0], [1], [0, 0, 1, 1], [], []>} : vector<168x32xf32>, vector<32x16xf32>, vector<168x16xf32> -> vector<168x16xf32>
    %c0_3 = arith.constant 0 : index
    %c0_4 = arith.constant 0 : index
    %3 = vector.load %arg4[%c0_3, %c0_4] : memref<168x16xf32, #tpu.memory_space<vmem>>, vector<168x16xf32>
    tpu.vector_store %arg4[%c0_3, %c0_4], %2 {strides = array<i32>} : memref<168x16xf32, #tpu.memory_space<vmem>>, vector<168x16xf32>,
    return
  }
  func.func @transform_0(%arg0: i32, %arg1: i32) -> (i32, i32) {
    %c0_i32 = arith.constant 0 : i32
    %c0_i32_0 = arith.constant 0 : i32
    return %arg0, %c0_i32 : i32, i32
  }
  func.func @transform_1(%arg0: i32, %arg1: i32) -> (i32, i32) {
    %c0_i32 = arith.constant 0 : i32
    %c0_i32_0 = arith.constant 0 : i32
    %c0_i32_1 = arith.constant 0 : i32
    return %c0_i32, %c0_i32_0 : i32, i32
  }
  func.func @transform_2(%arg0: i32, %arg1: i32) -> (i32, i32) {
    %c0_i32 = arith.constant 0 : i32
    return %arg0, %arg1 : i32, i32
  }
}

</mosaic_0001>

<llo_original>
// kernel: _project.1
$region0: #{_project.1}
  #allocation0 [shape = 'u32[]', space=smem, size = 0x4, offset = 0x4, fixed_abs, tag = 'smem constant byte address 0x4 - core index']
  #allocation1 [shape = 'u32[72,128]{1,0:T(1,128)}', space=vmem, size = 0x9000, scoped, tag = 'internal scratch']
  %s0 = inlined_call_operand.vmem [shape: f32[326,32], index: 0, kind: input, shape index: {}]
  %s1 = inlined_call_operand.vmem [shape: f32[32,16], index: 1, kind: input, shape index: {}]
  %s2 = inlined_call_operand.vmem [shape: f32[326,16], index: 2, kind: output, shape index: {}]
  %s3 = sld [smem:[#allocation0]]
  $region89: #{_project.1} parent=0
    _
  %s5 = ssub.s32 1, %s3
  %s6 = scalar_select 0, %s5, %s3
  $region1: #{_project.1} parent=0
    #allocation2 [shape = 'u8[172032]{0}', space=vmem, size = 0x2a000, scoped, tag = 'output window, operand 0']
    loop: start=0, step=1, limit=4
    $region2: #{_project.1} parent=1 // loop_pre_header
      _
    $region3: #{_project.1} parent=1 // loop_header
      %s8 = sphi 0, %s12
      %p9 = scmp.ge.s32.totalorder %s8, 4
      %s15 = sphi 0, %s27
      %s16 = sphi 0, %s23
      %s17 = sphi 0, %s15
      %s18 = sphi 0, %s16
      %s19 = sphi 0, %s17
      %s20 = sphi 0, %s18
      %s30 = sphi 0, %s32
      %s33 = sphi 0, %s30
      %s34 = sphi 0, %s33
      %s50 = sphi 0, %s34
      %s54 = sphi 0, %s54
      %s56 = sphi 0, %s54
      %s57 = sphi 0, %s56
      %s71 = sphi 0, %s57
      %s79 = sphi 0, %s81
      %s82 = sphi 0, %s79
      %s83 = sphi 0, %s82
      %s99 = sphi 0, %s83
    $region4: #{_project.1} parent=1 // loop_header_branch
      %11 = sbr.rel (%p9) target = $region8
    $region5: #{_project.1} parent=1 // loop_body
      %s13 = ssub.s32 %s8, 1
      %s14 = ssub.s32 %s8, 2
      %s21 = sadd.s32 1, %s16
      %p22 = scmp.ge.s32.totalorder %s21, 1
      %s23 = scalar_select %p22, 0, %s21
      %s24 = sadd.s32 1, %s15
      %s25 = scalar_select %p22, %s24, %s15
      %p26 = scmp.ge.s32.totalorder %s25, 2
      %s27 = scalar_select %p26, 0, %s25
      %s28 = ssub.s32 %s15, %s27
      %p29 = scmp.eq.s32.totalorder %s28, 0
      %s31 = sadd.s32 %s30, 1
      %s32 = scalar_select %p29, %s30, %s31
      %p35 = pneg %p29
      %p36 = scmp.eq.s32.totalorder %s8, 1
      %p37 = por %p35, %p36
      %p38 = scmp.ne.s32.totalorder %s30, %s33
      %p39 = scmp.eq.s32.totalorder %s8, 0
      %p40 = por %p38, %p39
      %p41 = scmp.ne.s32.totalorder %s30, %s33
      %p42 = scmp.eq.s32.totalorder %s13, 1
      %p43 = por %p41, %p42
      %p44 = scmp.ne.s32.totalorder %s33, %s34
      %p45 = scmp.eq.s32.totalorder %s13, 0
      %p46 = por %p44, %p45
      %p47 = scmp.ne.s32.totalorder %s33, %s34
      %p48 = scmp.eq.s32.totalorder %s14, 1
      %p49 = por %p47, %p48
      %p51 = scmp.ne.s32.totalorder %s34, %s50
      %p52 = scmp.eq.s32.totalorder %s14, 0
      %p53 = por %p51, %p52
      %s55 = sadd.s32 %s54, 1
      %p58 = scmp.eq.s32.totalorder %s8, 1
      %p59 = scmp.ne.s32.totalorder %s54, %s56
      %p60 = scmp.eq.s32.totalorder %s8, 0
      %p61 = por %p59, %p60
      %p62 = scmp.ne.s32.totalorder %s54, %s56
      %p63 = scmp.eq.s32.totalorder %s13, 1
      %p64 = por %p62, %p63
      %p65 = scmp.ne.s32.totalorder %s56, %s57
      %p66 = scmp.eq.s32.totalorder %s13, 0
      %p67 = por %p65, %p66
      %p68 = scmp.ne.s32.totalorder %s56, %s57
      %p69 = scmp.eq.s32.totalorder %s14, 1
      %p70 = por %p68, %p69
      %p72 = scmp.ne.s32.totalorder %s57, %s71
      %p73 = scmp.eq.s32.totalorder %s14, 0
      %p74 = por %p72, %p73
      %s75 = ssub.s32 %s15, %s27
      %s76 = ssub.s32 %s16, %s23
      %s77 = sor.u32 %s75, %s76
      %p78 = scmp.eq.s32.totalorder %s77, 0
      %s80 = sadd.s32 %s79, 1
      %s81 = scalar_select %p78, %s79, %s80
      %p84 = pneg %p78
      %p85 = scmp.eq.s32.totalorder %s8, 1
      %p86 = por %p84, %p85
      %p87 = scmp.ne.s32.totalorder %s79, %s82
      %p88 = scmp.eq.s32.totalorder %s8, 0
      %p89 = por %p87, %p88
      %p90 = scmp.ne.s32.totalorder %s79, %s82
      %p91 = scmp.eq.s32.totalorder %s13, 1
      %p92 = por %p90, %p91
      %p93 = scmp.ne.s32.totalorder %s82, %s83
      %p94 = scmp.eq.s32.totalorder %s13, 0
      %p95 = por %p93, %p94
      %p96 = scmp.ne.s32.totalorder %s82, %s83
      %p97 = scmp.eq.s32.totalorder %s14, 1
      %p98 = por %p96, %p97
      %p100 = scmp.ne.s32.totalorder %s83, %s99
      %p101 = scmp.eq.s32.totalorder %s14, 0
      %p102 = por %p100, %p101
      %p103 = scmp.le.s32.totalorder 1, %s8
      %p104 = scmp.lt.s32.totalorder %s8, 3
      %p105 = pnand %p103, %p104
      %p106 = pneg %p105
      // Predicated region
      $region9: #{_project.1} parent=5 // pred_check
        _
      $region10: #{_project.1} parent=5 // pred_check_branch
        %108 = sbr.rel (%p105) target = $region12
      $region11: #{_project.1} parent=5 // pred_region
        %s109 = ssub.s32 %s8, 1
        // Predicated region
        $region13: #{_project.1} parent=11 // pred_check
          %p110 = pneg %p67
        $region14: #{_project.1} parent=11 // pred_check_branch
          %112 = sbr.rel (%p110) target = $region16
        $region15: #{_project.1} parent=11 // pred_region
          _
        $region16: #{_project.1} parent=11 // pred_fallthru
          _
      $region12: #{_project.1} parent=5 // pred_fallthru
        _
      %p113 = scmp.lt.s32.totalorder %s8, 2
      // Predicated region
      $region17: #{_project.1} parent=5 // pred_check
        %p114 = pneg %p113
      $region18: #{_project.1} parent=5 // pred_check_branch
        %116 = sbr.rel (%p114) target = $region20
      $region19: #{_project.1} parent=5 // pred_region
        // Predicated region
        $region21: #{_project.1} parent=19 // pred_check
          %p117 = pneg %p40
        $region22: #{_project.1} parent=19 // pred_check_branch
          %119 = sbr.rel (%p117) target = $region24
        $region23: #{_project.1} parent=19 // pred_region
          %s120 = smul.u32 21, %s15
          %s121 = ssub.s32 41, %s120
          %p122 = scmp.lt.s32.totalorder %s121, 21
          %s123 = scalar_select %p122, %s121, 21
          %s124 = smul.u32 8, %s123
          %p125 = scmp.lt.s32.totalorder %s120, 40
          %s126 = scalar_select %p125, %s120, 40
          %s127 = smul.addr %s126, 8
          %s128 = scalar_lea.vmem %s0, %s127
          %s129 = smul.u32 21, %s15
          %s130 = ssub.s32 41, %s129
          %p131 = scmp.lt.s32.totalorder %s130, 21
          %s132 = scalar_select %p131, %s130, 21
          %s133 = smul.u32 8, %s132
        $region24: #{_project.1} parent=19 // pred_fallthru
          _
      $region20: #{_project.1} parent=5 // pred_fallthru
        _
      %p134 = scmp.le.s32.totalorder 1, %s8
      %p135 = scmp.lt.s32.totalorder %s8, 3
      %p136 = pnand %p134, %p135
      %p137 = pneg %p136
      // Predicated region
      $region25: #{_project.1} parent=5 // pred_check
        _
      $region26: #{_project.1} parent=5 // pred_check_branch
        %139 = sbr.rel (%p136) target = $region28
      $region27: #{_project.1} parent=5 // pred_region
        %s140 = ssub.s32 %s8, 1
        %s141 = smul.u32 21, %s17
        %s142 = ssub.s32 41, %s141
        %p143 = scmp.lt.s32.totalorder %s142, 21
        %s144 = scalar_select %p143, %s142, 21
        %s145 = smul.u32 8, %s144
        %p146 = scmp.lt.s32.totalorder %s141, 40
        %s147 = scalar_select %p146, %s141, 40
        %s148 = smul.addr %s147, 8
        %s149 = scalar_lea.vmem %s0, %s148
        %p150 = pneg %p46
        %p151 = pneg %p43
        %p152 = pneg %p67
        %p153 = pneg %p64
        %p154 = pneg %p95
        %p155 = pneg %p92
        %s156 = sand.u32 %s82, 1
        %s157 = sand.u32 %s82, 1
        %s158 = smul.addr %s157, 168
        %s159 = scalar_lea.vmem [#allocation2], %s158
        %s160 = smul.u32 21, %s17
        %s161 = ssub.s32 41, %s160
        %p162 = scmp.lt.s32.totalorder %s161, 21
        %s163 = scalar_select %p162, %s161, 21
        %s164 = smul.u32 8, %s163
        %p165 = scmp.lt.s32.totalorder %s160, 40
        %s166 = scalar_select %p165, %s160, 40
        %s167 = smul.addr %s166, 8
        %s168 = scalar_lea.vmem %s0, %s167
        %s169 = smul.u32 21, %s17
        %s170 = ssub.s32 41, %s169
        %p171 = scmp.lt.s32.totalorder %s170, 21
        %s172 = scalar_select %p171, %s170, 21
        %s173 = smul.u32 8, %s172
        %s174 = smul.u32 21, %s17
        %s175 = ssub.s32 41, %s174
        %p176 = scmp.lt.s32.totalorder %s175, 21
        %s177 = scalar_select %p176, %s175, 21
        %s178 = smul.u32 8, %s177
        %v179 = vld [vmem:[%s168] sm:$0xff]
        %v180 = vld [vmem:[%s168 + $0x8] sm:$0xff]
        %v181 = vld [vmem:[%s168 + $0x10] sm:$0xff]
        %v182 = vld [vmem:[%s168 + $0x18] sm:$0xff]
        %v183 = vld [vmem:[%s168 + $0x20] sm:$0xff]
        %v184 = vld [vmem:[%s168 + $0x28] sm:$0xff]
        %v185 = vld [vmem:[%s168 + $0x30] sm:$0xff]
        %v186 = vld [vmem:[%s168 + $0x38] sm:$0xff]
        %v187 = vld [vmem:[%s168 + $0x40] sm:$0xff]
        %v188 = vld [vmem:[%s168 + $0x48] sm:$0xff]
        %v189 = vld [vmem:[%s168 + $0x50] sm:$0xff]
        %v190 = vld [vmem:[%s168 + $0x58] sm:$0xff]
        %v191 = vld [vmem:[%s168 + $0x60] sm:$0xff]
        %v192 = vld [vmem:[%s168 + $0x68] sm:$0xff]
        %v193 = vld [vmem:[%s168 + $0x70] sm:$0xff]
        %v194 = vld [vmem:[%s168 + $0x78] sm:$0xff]
        %v195 = vld [vmem:[%s168 + $0x80] sm:$0xff]
        %v196 = vld [vmem:[%s168 + $0x88] sm:$0xff]
        %v197 = vld [vmem:[%s168 + $0x90] sm:$0xff]
        %v198 = vld [vmem:[%s168 + $0x98] sm:$0xff]
        %v199 = vld [vmem:[%s168 + $0xa0] sm:$0xff]
        %v200 = vld [vmem:[%s1] sm:$0xff]
        %v201 = vld [vmem:[%s1 + $0x8] sm:$0xff]
        %v202 = vld [vmem:[%s1 + $0x10] sm:$0xff]
        %v203 = vld [vmem:[%s1 + $0x18] sm:$0xff]
        %vm204 = vcmask 261120
        %v206 = vsel %vm204, %v179, 0
        %v209 = vsel %vm204, %v180, 0
        %v212 = vsel %vm204, %v181, 0
        %v215 = vsel %vm204, %v182, 0
        %v218 = vsel %vm204, %v183, 0
        %v221 = vsel %vm204, %v184, 0
        %v224 = vsel %vm204, %v185, 0
        %v227 = vsel %vm204, %v186, 0
        %v230 = vsel %vm204, %v187, 0
        %v233 = vsel %vm204, %v188, 0
        %v236 = vsel %vm204, %v189, 0
        %v239 = vsel %vm204, %v190, 0
        %v242 = vsel %vm204, %v191, 0
        %v245 = vsel %vm204, %v192, 0
        %v248 = vsel %vm204, %v193, 0
        %v251 = vsel %vm204, %v194, 0
        %v254 = vsel %vm204, %v195, 0
        %v257 = vsel %vm204, %v196, 0
        %v260 = vsel %vm204, %v197, 0
        %v263 = vsel %vm204, %v198, 0
        %v266 = vsel %vm204, %v199, 0
        %268 = vmatpush.msra.mxu0 0.0
        %269 = vmatpush.msra.mxu0 0.0
        %270 = vmatpush.msra.mxu0 0.0
        %271 = vmatpush.msra.mxu0 0.0
        %272 = vmatpush.msra.mxu0 0.0
        %273 = vmatpush.msra.mxu0 0.0
        %274 = vmatpush.msra.mxu0 0.0
        %275 = vmatpush.msra.mxu0 0.0
        %276 = vmatpush.msra.mxu0 0.0
        %277 = vmatpush.msra.mxu0 0.0
        %278 = vmatpush.msra.mxu0 0.0
        %279 = vmatpush.msra.mxu0 0.0
        %280 = vmatpush.msra.mxu0 %v203
        %281 = vmatpush.msra.mxu0 %v202
        %282 = vmatpush.msra.mxu0 %v201
        %283 = vmatpush.msra.mxu0 %v200
        %284 = vmatmul.f32.gmra.mxu0 %v206
        %v285 = vpop.f32.mrf.mxu0
        %v286 = vadd.f32 0.0, %v285
        %287 = vmatmul.f32.gmra.mxu0 %v209
        %v288 = vpop.f32.mrf.mxu0
        %v289 = vadd.f32 0.0, %v288
        %290 = vmatmul.f32.gmra.mxu0 %v212
        %v291 = vpop.f32.mrf.mxu0
        %v292 = vadd.f32 0.0, %v291
        %293 = vmatmul.f32.gmra.mxu0 %v215
        %v294 = vpop.f32.mrf.mxu0
        %v295 = vadd.f32 0.0, %v294
        %296 = vmatmul.f32.gmra.mxu0 %v218
        %v297 = vpop.f32.mrf.mxu0
        %v298 = vadd.f32 0.0, %v297
        %299 = vmatmul.f32.gmra.mxu0 %v221
        %v300 = vpop.f32.mrf.mxu0
        %v301 = vadd.f32 0.0, %v300
        %302 = vmatmul.f32.gmra.mxu0 %v224
        %v303 = vpop.f32.mrf.mxu0
        %v304 = vadd.f32 0.0, %v303
        %305 = vmatmul.f32.gmra.mxu0 %v227
        %v306 = vpop.f32.mrf.mxu0
        %v307 = vadd.f32 0.0, %v306
        %308 = vmatmul.f32.gmra.mxu0 %v230
        %v309 = vpop.f32.mrf.mxu0
        %v310 = vadd.f32 0.0, %v309
        %311 = vmatmul.f32.gmra.mxu0 %v233
        %v312 = vpop.f32.mrf.mxu0
        %v313 = vadd.f32 0.0, %v312
        %314 = vmatmul.f32.gmra.mxu0 %v236
        %v315 = vpop.f32.mrf.mxu0
        %v316 = vadd.f32 0.0, %v315
        %317 = vmatmul.f32.gmra.mxu0 %v239
        %v318 = vpop.f32.mrf.mxu0
        %v319 = vadd.f32 0.0, %v318
        %320 = vmatmul.f32.gmra.mxu0 %v242
        %v321 = vpop.f32.mrf.mxu0
        %v322 = vadd.f32 0.0, %v321
        %323 = vmatmul.f32.gmra.mxu0 %v245
        %v324 = vpop.f32.mrf.mxu0
        %v325 = vadd.f32 0.0, %v324
        %326 = vmatmul.f32.gmra.mxu0 %v248
        %v327 = vpop.f32.mrf.mxu0
        %v328 = vadd.f32 0.0, %v327
        %329 = vmatmul.f32.gmra.mxu0 %v251
        %v330 = vpop.f32.mrf.mxu0
        %v331 = vadd.f32 0.0, %v330
        %332 = vmatmul.f32.gmra.mxu0 %v254
        %v333 = vpop.f32.mrf.mxu0
        %v334 = vadd.f32 0.0, %v333
        %335 = vmatmul.f32.gmra.mxu0 %v257
        %v336 = vpop.f32.mrf.mxu0
        %v337 = vadd.f32 0.0, %v336
        %338 = vmatmul.f32.gmra.mxu0 %v260
        %v339 = vpop.f32.mrf.mxu0
        %v340 = vadd.f32 0.0, %v339
        %341 = vmatmul.f32.gmra.mxu0 %v263
        %v342 = vpop.f32.mrf.mxu0
        %v343 = vadd.f32 0.0, %v342
        %344 = vmatmul.f32.gmra.mxu0 %v266
        %v345 = vpop.f32.mrf.mxu0
        %v346 = vadd.f32 0.0, %v345
        %347 = vdwg.mxu0
        %vm348 = vcmask 130048
        %349 = vst.msk [vmem:[%s159] sm:$0xff] %vm348, %v286
        %350 = vst.msk [vmem:[%s159 + $0x8] sm:$0xff] %vm348, %v289
        %351 = vst.msk [vmem:[%s159 + $0x10] sm:$0xff] %vm348, %v292
        %352 = vst.msk [vmem:[%s159 + $0x18] sm:$0xff] %vm348, %v295
        %353 = vst.msk [vmem:[%s159 + $0x20] sm:$0xff] %vm348, %v298
        %354 = vst.msk [vmem:[%s159 + $0x28] sm:$0xff] %vm348, %v301
        %355 = vst.msk [vmem:[%s159 + $0x30] sm:$0xff] %vm348, %v304
        %356 = vst.msk [vmem:[%s159 + $0x38] sm:$0xff] %vm348, %v307
        %357 = vst.msk [vmem:[%s159 + $0x40] sm:$0xff] %vm348, %v310
        %358 = vst.msk [vmem:[%s159 + $0x48] sm:$0xff] %vm348, %v313
        %359 = vst.msk [vmem:[%s159 + $0x50] sm:$0xff] %vm348, %v316
        %360 = vst.msk [vmem:[%s159 + $0x58] sm:$0xff] %vm348, %v319
        %361 = vst.msk [vmem:[%s159 + $0x60] sm:$0xff] %vm348, %v322
        %362 = vst.msk [vmem:[%s159 + $0x68] sm:$0xff] %vm348, %v325
        %363 = vst.msk [vmem:[%s159 + $0x70] sm:$0xff] %vm348, %v328
        %364 = vst.msk [vmem:[%s159 + $0x78] sm:$0xff] %vm348, %v331
        %365 = vst.msk [vmem:[%s159 + $0x80] sm:$0xff] %vm348, %v334
        %366 = vst.msk [vmem:[%s159 + $0x88] sm:$0xff] %vm348, %v337
        %367 = vst.msk [vmem:[%s159 + $0x90] sm:$0xff] %vm348, %v340
        %368 = vst.msk [vmem:[%s159 + $0x98] sm:$0xff] %vm348, %v343
        %369 = vst.msk [vmem:[%s159 + $0xa0] sm:$0xff] %vm348, %v346
        %s370 = sand.u32 %s82, 1
        %s371 = sand.u32 %s82, 1
        %s372 = smul.addr %s371, 168
        %s373 = scalar_lea.vmem [#allocation2], %s372
        // Predicated region
        $region29: #{_project.1} parent=27 // pred_check
          %p374 = pneg %p92
        $region30: #{_project.1} parent=27 // pred_check_branch
          %376 = sbr.rel (%p374) target = $region32
        $region31: #{_project.1} parent=27 // pred_region
          %s377 = smul.u32 21, %s17
          %s378 = ssub.s32 41, %s377
          %p379 = scmp.lt.s32.totalorder %s378, 21
          %s380 = scalar_select %p379, %s378, 21
          %s381 = smul.u32 8, %s380
          %p382 = scmp.ne.s32.totalorder 0, %s381
          %s383 = sadd.s32 %s18, %s377
          %s384 = smul.addr %s383, 8
          %s385 = scalar_lea.vmem %s2, %s384
          // Predicated region
          $region33: #{_project.1} parent=31 // pred_check
            %p386 = pneg %p382
          $region34: #{_project.1} parent=31 // pred_check_branch
            %388 = sbr.rel (%p386) target = $region36
          $region35: #{_project.1} parent=31 // pred_region
            // Predicated region
            $region37: #{_project.1} parent=35 // pred_check
              _
            $region38: #{_project.1} parent=35 // pred_check_branch
              %390 = sbr.rel (0) target = $region40
            $region39: #{_project.1} parent=35 // pred_region
              // Predicated region
              $region59: #{_project.1} parent=39 // pred_check
                _
              $region60: #{_project.1} parent=39 // pred_check_branch
                %481 = sbr.rel (0) target = $region62
              $region61: #{_project.1} parent=39 // pred_region
                %s482 = sdiv.u32.pop %s380, 21
                %s483 = srem.u32.pop %s380, 21
                // While loop
                $region63: #{_project.1} parent=61 // loop_pre_header
                  _
                $region64: #{_project.1} parent=61 // loop_header
                  %s485 = sphi 0, %s487
                  %p486 = scmp.ge.s32.totalorder %s485, %s482
                  %s490 = sphi 0, %s537
                  %s491 = sphi %s373, %s540
                  %s492 = sphi %s385, %s541
                $region65: #{_project.1} parent=61 // loop_header_branch
                  %489 = sbr.rel (%p486) target = $region69
                $region66: #{_project.1} parent=61 // loop_body
                  %v493 = vld [vmem:[%s491] sm:$0xff]
                  %494 = vst [vmem:[%s492] sm:$0xff] %v493
                  %v495 = vld [vmem:[%s491 + $0x8] sm:$0xff]
                  %496 = vst [vmem:[%s492 + $0x8] sm:$0xff] %v495
                  %v497 = vld [vmem:[%s491 + $0x10] sm:$0xff]
                  %498 = vst [vmem:[%s492 + $0x10] sm:$0xff] %v497
                  %v499 = vld [vmem:[%s491 + $0x18] sm:$0xff]
                  %500 = vst [vmem:[%s492 + $0x18] sm:$0xff] %v499
                  %v501 = vld [vmem:[%s491 + $0x20] sm:$0xff]
                  %502 = vst [vmem:[%s492 + $0x20] sm:$0xff] %v501
                  %v503 = vld [vmem:[%s491 + $0x28] sm:$0xff]
                  %504 = vst [vmem:[%s492 + $0x28] sm:$0xff] %v503
                  %v505 = vld [vmem:[%s491 + $0x30] sm:$0xff]
                  %506 = vst [vmem:[%s492 + $0x30] sm:$0xff] %v505
                  %v507 = vld [vmem:[%s491 + $0x38] sm:$0xff]
                  %508 = vst [vmem:[%s492 + $0x38] sm:$0xff] %v507
                  %v509 = vld [vmem:[%s491 + $0x40] sm:$0xff]
                  %510 = vst [vmem:[%s492 + $0x40] sm:$0xff] %v509
                  %v511 = vld [vmem:[%s491 + $0x48] sm:$0xff]
                  %512 = vst [vmem:[%s492 + $0x48] sm:$0xff] %v511
                  %v513 = vld [vmem:[%s491 + $0x50] sm:$0xff]
                  %514 = vst [vmem:[%s492 + $0x50] sm:$0xff] %v513
                  %v515 = vld [vmem:[%s491 + $0x58] sm:$0xff]
                  %516 = vst [vmem:[%s492 + $0x58] sm:$0xff] %v515
                  %v517 = vld [vmem:[%s491 + $0x60] sm:$0xff]
                  %518 = vst [vmem:[%s492 + $0x60] sm:$0xff] %v517
                  %v519 = vld [vmem:[%s491 + $0x68] sm:$0xff]
                  %520 = vst [vmem:[%s492 + $0x68] sm:$0xff] %v519
                  %v521 = vld [vmem:[%s491 + $0x70] sm:$0xff]
                  %522 = vst [vmem:[%s492 + $0x70] sm:$0xff] %v521
                  %v523 = vld [vmem:[%s491 + $0x78] sm:$0xff]
                  %524 = vst [vmem:[%s492 + $0x78] sm:$0xff] %v523
                  %v525 = vld [vmem:[%s491 + $0x80] sm:$0xff]
                  %526 = vst [vmem:[%s492 + $0x80] sm:$0xff] %v525
                  %v527 = vld [vmem:[%s491 + $0x88] sm:$0xff]
                  %528 = vst [vmem:[%s492 + $0x88] sm:$0xff] %v527
                  %v529 = vld [vmem:[%s491 + $0x90] sm:$0xff]
                  %530 = vst [vmem:[%s492 + $0x90] sm:$0xff] %v529
                  %v531 = vld [vmem:[%s491 + $0x98] sm:$0xff]
                  %532 = vst [vmem:[%s492 + $0x98] sm:$0xff] %v531
                  %v533 = vld [vmem:[%s491 + $0xa0] sm:$0xff]
                  %534 = vst [vmem:[%s492 + $0xa0] sm:$0xff] %v533
                  %s535 = sadd.s32 1, %s490
                  %p536 = scmp.ge.s32.totalorder %s535, %s482
                  %s537 = scalar_select %p536, 0, %s535
                  %s538 = smul.u32 %s537, 168
                  %s539 = smul.u32 %s537, 168
                  %s540 = scalar_lea.vmem %s373, %s538 [#allocation2]
                  %s541 = scalar_lea.vmem %s385, %s539
                $region67: #{_project.1} parent=61 // loop_footer
                  %s487 = sadd.s32 %s485, 1
                $region68: #{_project.1} parent=61 // loop_footer_branch
                  %484 = sbr.rel target = $region64
                $region69: #{_project.1} parent=61 // loop_exit
                  _
                %s542 = sdiv.u32.pop %s380, 21
                %s543 = srem.u32.pop %s380, 21
                %s544 = smul.u32 %s542, 21
                %s545 = smul.u32 8, %s544
                %s546 = scalar_lea.vmem %s373, %s545 [#allocation2]
                %s547 = smul.u32 8, %s544
                %s548 = scalar_lea.vmem %s385, %s547
                // While loop
                $region70: #{_project.1} parent=61 // loop_pre_header
                  _
                $region71: #{_project.1} parent=61 // loop_header
                  %s550 = sphi 0, %s552
                  %p551 = scmp.ge.s32.totalorder %s550, %s543
                  %s555 = sphi 0, %s562
                  %s556 = sphi %s546, %s565
                  %s557 = sphi %s548, %s566
                $region72: #{_project.1} parent=61 // loop_header_branch
                  %554 = sbr.rel (%p551) target = $region76
                $region73: #{_project.1} parent=61 // loop_body
                  %v558 = vld [vmem:[%s556] sm:$0xff]
                  %559 = vst [vmem:[%s557] sm:$0xff] %v558
                  %s560 = sadd.s32 1, %s555
                  %p561 = scmp.ge.s32.totalorder %s560, %s543
                  %s562 = scalar_select %p561, 0, %s560
                  %s563 = smul.u32 %s562, 8
                  %s564 = smul.u32 %s562, 8
                  %s565 = scalar_lea.vmem %s546, %s563 [#allocation2]
                  %s566 = scalar_lea.vmem %s548, %s564
                $region74: #{_project.1} parent=61 // loop_footer
                  %s552 = sadd.s32 %s550, 1
                $region75: #{_project.1} parent=61 // loop_footer_branch
                  %549 = sbr.rel target = $region71
                $region76: #{_project.1} parent=61 // loop_exit
                  _
              $region62: #{_project.1} parent=39 // pred_fallthru
                _
              // Predicated region
              $region77: #{_project.1} parent=39 // pred_check
                _
              $region78: #{_project.1} parent=39 // pred_check_branch
                %568 = sbr.rel target = $region80
              $region79: #{_project.1} parent=39 // pred_region
                _
              $region80: #{_project.1} parent=39 // pred_fallthru
                _
            $region40: #{_project.1} parent=35 // pred_fallthru
              _
            // Predicated region
            $region41: #{_project.1} parent=35 // pred_check
              _
            $region42: #{_project.1} parent=35 // pred_check_branch
              %392 = sbr.rel target = $region44
            $region43: #{_project.1} parent=35 // pred_region
              %s394 = ssub.s32 256, 1
              %s395 = sdiv.u32.pop %s380, 21
              %s396 = srem.u32.pop %s380, 21
              // While loop
              $region45: #{_project.1} parent=43 // loop_pre_header
                _
              $region46: #{_project.1} parent=43 // loop_header
                %s398 = sphi 0, %s400
                %p399 = scmp.ge.s32.totalorder %s398, %s395
                %s403 = sphi 0, %s450
                %s404 = sphi %s373, %s453
                %s405 = sphi %s385, %s454
              $region47: #{_project.1} parent=43 // loop_header_branch
                %402 = sbr.rel (%p399) target = $region51
              $region48: #{_project.1} parent=43 // loop_body
                %v406 = vld [vmem:[%s404] sm:%s394]
                %407 = vst [vmem:[%s405] sm:%s394] %v406
                %v408 = vld [vmem:[%s404 + $0x8] sm:%s394]
                %409 = vst [vmem:[%s405 + $0x8] sm:%s394] %v408
                %v410 = vld [vmem:[%s404 + $0x10] sm:%s394]
                %411 = vst [vmem:[%s405 + $0x10] sm:%s394] %v410
                %v412 = vld [vmem:[%s404 + $0x18] sm:%s394]
                %413 = vst [vmem:[%s405 + $0x18] sm:%s394] %v412
                %v414 = vld [vmem:[%s404 + $0x20] sm:%s394]
                %415 = vst [vmem:[%s405 + $0x20] sm:%s394] %v414
                %v416 = vld [vmem:[%s404 + $0x28] sm:%s394]
                %417 = vst [vmem:[%s405 + $0x28] sm:%s394] %v416
                %v418 = vld [vmem:[%s404 + $0x30] sm:%s394]
                %419 = vst [vmem:[%s405 + $0x30] sm:%s394] %v418
                %v420 = vld [vmem:[%s404 + $0x38] sm:%s394]
                %421 = vst [vmem:[%s405 + $0x38] sm:%s394] %v420
                %v422 = vld [vmem:[%s404 + $0x40] sm:%s394]
                %423 = vst [vmem:[%s405 + $0x40] sm:%s394] %v422
                %v424 = vld [vmem:[%s404 + $0x48] sm:%s394]
                %425 = vst [vmem:[%s405 + $0x48] sm:%s394] %v424
                %v426 = vld [vmem:[%s404 + $0x50] sm:%s394]
                %427 = vst [vmem:[%s405 + $0x50] sm:%s394] %v426
                %v428 = vld [vmem:[%s404 + $0x58] sm:%s394]
                %429 = vst [vmem:[%s405 + $0x58] sm:%s394] %v428
                %v430 = vld [vmem:[%s404 + $0x60] sm:%s394]
                %431 = vst [vmem:[%s405 + $0x60] sm:%s394] %v430
                %v432 = vld [vmem:[%s404 + $0x68] sm:%s394]
                %433 = vst [vmem:[%s405 + $0x68] sm:%s394] %v432
                %v434 = vld [vmem:[%s404 + $0x70] sm:%s394]
                %435 = vst [vmem:[%s405 + $0x70] sm:%s394] %v434
                %v436 = vld [vmem:[%s404 + $0x78] sm:%s394]
                %437 = vst [vmem:[%s405 + $0x78] sm:%s394] %v436
                %v438 = vld [vmem:[%s404 + $0x80] sm:%s394]
                %439 = vst [vmem:[%s405 + $0x80] sm:%s394] %v438
                %v440 = vld [vmem:[%s404 + $0x88] sm:%s394]
                %441 = vst [vmem:[%s405 + $0x88] sm:%s394] %v440
                %v442 = vld [vmem:[%s404 + $0x90] sm:%s394]
                %443 = vst [vmem:[%s405 + $0x90] sm:%s394] %v442
                %v444 = vld [vmem:[%s404 + $0x98] sm:%s394]
                %445 = vst [vmem:[%s405 + $0x98] sm:%s394] %v444
                %v446 = vld [vmem:[%s404 + $0xa0] sm:%s394]
                %447 = vst [vmem:[%s405 + $0xa0] sm:%s394] %v446
                %s448 = sadd.s32 1, %s403
                %p449 = scmp.ge.s32.totalorder %s448, %s395
                %s450 = scalar_select %p449, 0, %s448
                %s451 = smul.u32 %s450, 168
                %s452 = smul.u32 %s450, 168
                %s453 = scalar_lea.vmem %s373, %s451 [#allocation2]
                %s454 = scalar_lea.vmem %s385, %s452
              $region49: #{_project.1} parent=43 // loop_footer
                %s400 = sadd.s32 %s398, 1
              $region50: #{_project.1} parent=43 // loop_footer_branch
                %397 = sbr.rel target = $region46
              $region51: #{_project.1} parent=43 // loop_exit
                _
              %s455 = sdiv.u32.pop %s380, 21
              %s456 = srem.u32.pop %s380, 21
              %s457 = smul.u32 %s455, 21
              %s458 = smul.u32 8, %s457
              %s459 = scalar_lea.vmem %s373, %s458 [#allocation2]
              %s460 = smul.u32 8, %s457
              %s461 = scalar_lea.vmem %s385, %s460
              // While loop
              $region52: #{_project.1} parent=43 // loop_pre_header
                _
              $region53: #{_project.1} parent=43 // loop_header
                %s463 = sphi 0, %s465
                %p464 = scmp.ge.s32.totalorder %s463, %s456
                %s468 = sphi 0, %s475
                %s469 = sphi %s459, %s478
                %s470 = sphi %s461, %s479
              $region54: #{_project.1} parent=43 // loop_header_branch
                %467 = sbr.rel (%p464) target = $region58
              $region55: #{_project.1} parent=43 // loop_body
                %v471 = vld [vmem:[%s469] sm:%s394]
                %472 = vst [vmem:[%s470] sm:%s394] %v471
                %s473 = sadd.s32 1, %s468
                %p474 = scmp.ge.s32.totalorder %s473, %s456
                %s475 = scalar_select %p474, 0, %s473
                %s476 = smul.u32 %s475, 8
                %s477 = smul.u32 %s475, 8
                %s478 = scalar_lea.vmem %s459, %s476 [#allocation2]
                %s479 = scalar_lea.vmem %s461, %s477
              $region56: #{_project.1} parent=43 // loop_footer
                %s465 = sadd.s32 %s463, 1
              $region57: #{_project.1} parent=43 // loop_footer_branch
                %462 = sbr.rel target = $region53
              $region58: #{_project.1} parent=43 // loop_exit
                _
            $region44: #{_project.1} parent=35 // pred_fallthru
              _
          $region36: #{_project.1} parent=31 // pred_fallthru
            _
          %569 = vnop
        $region32: #{_project.1} parent=27 // pred_fallthru
          _
      $region28: #{_project.1} parent=5 // pred_fallthru
        _
      %p570 = scmp.le.s32.totalorder 2, %s8
      // Predicated region
      $region81: #{_project.1} parent=5 // pred_check
        %p571 = pneg %p570
      $region82: #{_project.1} parent=5 // pred_check_branch
        %573 = sbr.rel (%p571) target = $region84
      $region83: #{_project.1} parent=5 // pred_region
        %s574 = ssub.s32 %s8, 2
        // Predicated region
        $region85: #{_project.1} parent=83 // pred_check
          %p575 = pneg %p98
        $region86: #{_project.1} parent=83 // pred_check_branch
          %577 = sbr.rel (%p575) target = $region88
        $region87: #{_project.1} parent=83 // pred_region
          %s578 = sand.u32 %s83, 1
          %s579 = sand.u32 %s83, 1
          %s580 = smul.addr %s579, 168
          %s581 = scalar_lea.vmem [#allocation2], %s580
        $region88: #{_project.1} parent=83 // pred_fallthru
          _
      $region84: #{_project.1} parent=5 // pred_fallthru
        _
    $region6: #{_project.1} parent=1 // loop_footer
      %s12 = sadd.s32 1, %s8
    $region7: #{_project.1} parent=1 // loop_footer_branch
      %7 = sbr.rel target = $region3
    $region8: #{_project.1} parent=1 // loop_exit
      _

</llo_original>
